<compile_context>
chip_gen: v5e
topology: v5e:2x2
jax: 0.10.0
libtpu: 0.0.40
codegen_flags: <defaults>
</compile_context>

<pallas_src>
import math

import jax
import jax.numpy as jnp
from jax import lax
from jax.experimental import pallas as pl
from jax.experimental.pallas import tpu as pltpu

_LOG_2PI = math.log(2.0 * math.pi)


def _rank1_gm_kernel(x_ref, dinv_ref, u_ref, coef_ref, bias_ref, lbt_ref,
                     ll_ref, ne_ref):
    """Rank-1 Gaussian mixture log-likelihood for one batch tile.

    x_ref    : VMEM (TB, D)  batch tile, native dtype (cast to f32 in-register)
    dinv_ref : VMEM (K, D)   exp(-log_diagonals)                (constant)
    u_ref    : VMEM (K, D)   v * d_inv                          (constant)
    coef_ref : VMEM (K, 1)   0.5 / (1 + v^T D^-1 v)             (constant)
    bias_ref : VMEM (K, 1)   logbias + log_softmax(logits)      (constant)
    lbt_ref  : VMEM (1, 1)   logsumexp_k(logbias + log_softmax) (constant)
    ll_ref   : VMEM (1, TB)  log-likelihood   (batch on lanes -> dense stores)
    ne_ref   : VMEM (1, TB)  normalized energy
    """
    x = x_ref[...].astype(jnp.float32)                           # (TB, D)

    # Two MXU matmuls in NT form: contract the feature dim of both operands,
    # keeping the batch on the lane axis of the (K, TB) results.
    dn = (((1,), (1,)), ((), ()))
    s1 = lax.dot_general(dinv_ref[...], x * x, dn,
                         preferred_element_type=jnp.float32)     # (K, TB)
    s2 = lax.dot_general(u_ref[...], x, dn,
                         preferred_element_type=jnp.float32)     # (K, TB)

    # ll = logbias + log_softmax - energy, energy = 0.5*s1 - coef*s2^2
    ll = bias_ref[...] - 0.5 * s1 + (s2 * s2) * coef_ref[...]    # (K, TB)

    # logsumexp over mixture components (sublane reduction over K).
    m = jnp.max(ll, axis=0, keepdims=True)                       # (1, TB)
    loglik = jnp.log(jnp.sum(jnp.exp(ll - m), axis=0, keepdims=True)) + m

    ll_ref[...] = loglik
    ne_ref[...] = lbt_ref[...] - loglik                          # (1,1)-(1,TB)


def _round_down(n, m):
    return (n // m) * m


def _pick_batch_tile(B, D):
    """Byte-budget-driven batch tile (multiple of 128, >=2 tiles when possible)."""
    if B <= 128:
        return B
    lane_d = ((D + 127) // 128) * 128           # lane padding for D < 128
    # ~24 MiB across {2 pipelined x buffers, f32 cast, x*x temp, slack}.
    budget_bytes = 24 * 1024 * 1024
    tb = budget_bytes // (5 * 4 * lane_d)
    tb = max(128, _round_down(tb, 128))
    tb = min(tb, _round_down(B, 128))
    # v7x megacore: keep >=2 grid tiles so both TensorCores get work.
    if B >= 256:
        tb = min(tb, max(128, _round_down(B // 2, 128)))
    return tb


def rank1_gaussian_mixture(x, mixture_logits, v, log_diagonals):
    """Pallas implementation of Rank1GaussianMixture.forward.

    x: (B, D); mixture_logits: (K,); v, log_diagonals: (K, D).
    Returns (loglikelihood (B,), normalized_energy (B,)), float32.
    """
    B, D = x.shape
    K = mixture_logits.shape[0]
    assert v.shape == (K, D) and log_diagonals.shape == (K, D)

    # ---- parameter-only math: tiny (K,D)/(K,1) tensors, computed ONCE here ----
    v32 = v.astype(jnp.float32)
    ld32 = log_diagonals.astype(jnp.float32)
    logits32 = mixture_logits.astype(jnp.float32)

    d_inv = jnp.exp(-ld32)                                        # (K, D)
    u = v32 * d_inv                                               # (K, D)
    vdv = jnp.sum(v32 * v32 * d_inv, axis=1, keepdims=True)       # (K, 1)
    coef = 0.5 / (1.0 + vdv)                                      # (K, 1)
    logbias = -0.5 * (jnp.float32(D * _LOG_2PI)
                      + jnp.sum(ld32, axis=1, keepdims=True)
                      + jnp.log1p(vdv))                           # (K, 1)
    logsm = jax.nn.log_softmax(logits32).reshape(K, 1)            # (K, 1)
    bias = logbias + logsm                                        # (K, 1)
    logbias_total = jax.scipy.special.logsumexp(bias, axis=0).reshape(1, 1)

    # x stays in its native dtype (no wrapper upcast => no extra HBM pass);
    # x.detach() in torch is a no-op for the forward value.
    x_itemsize = jnp.dtype(x.dtype).itemsize

    TB = _pick_batch_tile(B, D)
    grid = (pl.cdiv(B, TB),)

    # Rough padded-VMEM estimate -> explicit scoped limit (<= 40 MiB is safe on
    # v5e/v6e/v7x and above every generation's default scoped limit).
    lane_d = ((D + 127) // 128) * 128
    tbp = ((TB + 7) // 8) * 8
    tb_lane = max(128, ((TB + 127) // 128) * 128)
    kp = ((K + 7) // 8) * 8
    vmem_est = (2 * tbp * lane_d * x_itemsize      # double-buffered x tiles
                + 2 * tbp * lane_d * 4             # f32 cast + x*x temporaries
                + 6 * kp * tb_lane * 4             # (K,TB) s1/s2/ll intermediates
                + 4 * kp * lane_d * 4              # parameter blocks (generous)
                + 4 * 8 * tb_lane * 4)             # (1,TB) outputs
    vmem_limit = int(min(40 * 2**20, max(32 * 2**20, 2 * vmem_est)))

    cost = pl.CostEstimate(
        flops=int(4 * B * K * D + 10 * B * K),
        transcendentals=int(2 * B * K),
        bytes_accessed=int(B * D * x_itemsize + 2 * B * 4
                           + (2 * K * D + 3 * K + 1) * 4),
    )

    ll2d, ne2d = pl.pallas_call(
        _rank1_gm_kernel,
        out_shape=(jax.ShapeDtypeStruct((1, B), jnp.float32),
                   jax.ShapeDtypeStruct((1, B), jnp.float32)),
        grid_spec=pltpu.PrefetchScalarGridSpec(
            num_scalar_prefetch=0,
            grid=grid,
            in_specs=[
                pl.BlockSpec((TB, D), lambda i: (i, 0)),   # x tile (streams)
                pl.BlockSpec((K, D), lambda i: (0, 0)),    # d_inv     (constant)
                pl.BlockSpec((K, D), lambda i: (0, 0)),    # u         (constant)
                pl.BlockSpec((K, 1), lambda i: (0, 0)),    # coef      (constant)
                pl.BlockSpec((K, 1), lambda i: (0, 0)),    # logbias+logsm
                pl.BlockSpec((1, 1), lambda i: (0, 0)),    # total logbias
            ],
            out_specs=(
                pl.BlockSpec((1, TB), lambda i: (0, i)),
                pl.BlockSpec((1, TB), lambda i: (0, i)),
            ),
        ),
        compiler_params=pltpu.CompilerParams(
            dimension_semantics=("parallel",),
            vmem_limit_bytes=vmem_limit,
        ),
        cost_estimate=cost,
    )(x, d_inv, u, coef, bias, logbias_total)

    # TODO(synk): if D ever grows beyond what a single (TB, D) tile can hold in
    # VMEM, add a K-reduction grid axis over D with an f32 accumulator; at
    # realistic mixture sizes a single D block is optimal.
    return ll2d.reshape(B), ne2d.reshape(B)


def _reference(x, mixture_logits, v, log_diagonals):
    """Plain-JAX port of the PyTorch forward, for correctness checking."""
    B, D = x.shape
    xf = x.astype(jnp.float32)
    d_inv = jnp.exp(-log_diagonals)
    u = v * d_inv
    vdv = jnp.sum(v ** 2 * d_inv, axis=1)
    energy = 0.5 * (xf ** 2 @ d_inv.T - (xf @ u.T) ** 2 / (1.0 + vdv))
    logbias = -0.5 * (D * jnp.log(2.0 * jnp.pi) + log_diagonals.sum(1)
                      + jnp.log(1.0 + vdv))
    logsm = jax.nn.log_softmax(mixture_logits)
    ll = logbias[None, :] - energy + logsm[None, :]
    loglik = jax.scipy.special.logsumexp(ll, axis=1)
    logbias_total = jax.scipy.special.logsumexp(logbias + logsm, axis=0)
    return loglik, -loglik + logbias_total


def _check(B, D, K, seed):
    key = jax.random.PRNGKey(seed)
    kx, kl, kv, kd = jax.random.split(key, 4)
    x = jax.random.normal(kx, (B, D), dtype=jnp.float32)
    # The module initializes its parameters to zeros; use small random values
    # so the mixture math is actually exercised by the test.
    mixture_logits = 0.5 * jax.random.normal(kl, (K,), dtype=jnp.float32)
    v = 0.3 * jax.random.normal(kv, (K, D), dtype=jnp.float32)
    log_diagonals = 0.2 * jax.random.normal(kd, (K, D), dtype=jnp.float32)

    loglik, nenergy = rank1_gaussian_mixture(x, mixture_logits, v, log_diagonals)
    loglik = jax.block_until_ready(loglik)
    nenergy = jax.block_until_ready(nenergy)

    ref_ll, ref_ne = _reference(x, mixture_logits, v, log_diagonals)
    assert loglik.shape == (B,) and nenergy.shape == (B,)
    assert bool(jnp.all(jnp.isfinite(loglik)))
    assert bool(jnp.all(jnp.isfinite(nenergy)))
    assert float(jnp.max(jnp.abs(loglik - ref_ll))) < 1e-3
    assert float(jnp.max(jnp.abs(nenergy - ref_ne))) < 1e-3


if __name__ == "__main__":
    # Small shapes consistent with the module: B samples of dim D, K components.
    _check(B=8, D=32, K=4, seed=0)      # single full-block tile path
    _check(B=300, D=32, K=4, seed=0)    # multi-tile path with a partial last tile
    print("KERNEL_OK")
</pallas_src>

<mosaic_0001>
module attributes {stable_mosaic.version = 11 : i64} {
  func.func @_rank1_gm_kernel(%arg0: i32, %arg1: memref<8x32xf32, #tpu.memory_space<vmem>>, %arg2: memref<4x32xf32, #tpu.memory_space<vmem>>, %arg3: memref<4x32xf32, #tpu.memory_space<vmem>>, %arg4: memref<4x1xf32, #tpu.memory_space<vmem>>, %arg5: memref<4x1xf32, #tpu.memory_space<vmem>>, %arg6: memref<1x1xf32, #tpu.memory_space<vmem>>, %arg7: memref<1x8xf32, #tpu.memory_space<vmem>>, %arg8: memref<1x8xf32, #tpu.memory_space<vmem>>) attributes {dimension_semantics = [#tpu.dimension_semantics<parallel>], iteration_bounds = array<i64: 1>, scalar_prefetch = 0 : i64, scratch_operands = 0 : i64, tpu.core_type = #tpu.core_type<tc>, window_params = [{transform_indices = @transform_0, window_bounds = array<i64: 8, 32>}, {pipeline_mode = #tpu.pipeline_mode<synchronous>, transform_indices = @transform_1, window_bounds = array<i64: 4, 32>}, {pipeline_mode = #tpu.pipeline_mode<synchronous>, transform_indices = @transform_2, window_bounds = array<i64: 4, 32>}, {pipeline_mode = #tpu.pipeline_mode<synchronous>, transform_indices = @transform_3, window_bounds = array<i64: 4, 1>}, {pipeline_mode = #tpu.pipeline_mode<synchronous>, transform_indices = @transform_4, window_bounds = array<i64: 4, 1>}, {pipeline_mode = #tpu.pipeline_mode<synchronous>, transform_indices = @transform_5, window_bounds = array<i64: 1, 1>}, {transform_indices = @transform_6, window_bounds = array<i64: 1, 8>}, {transform_indices = @transform_7, window_bounds = array<i64: 1, 8>}]} {
    %c0 = arith.constant 0 : index
    %c0_0 = arith.constant 0 : index
    %0 = vector.load %arg1[%c0, %c0_0] : memref<8x32xf32, #tpu.memory_space<vmem>>, vector<8x32xf32>
    %c0_1 = arith.constant 0 : index
    %c0_2 = arith.constant 0 : index
    %1 = vector.load %arg2[%c0_1, %c0_2] : memref<4x32xf32, #tpu.memory_space<vmem>>, vector<4x32xf32>
    %2 = arith.mulf %0, %0 : vector<8x32xf32>
    %cst = arith.constant dense<0.000000e+00> : vector<4x8xf32>
    %3 = tpu.matmul %1, %2, %cst {dimension_numbers = #tpu.dot_dimension_numbers<[1], [1], [0], [0], [0, 0, 1, 0], [], []>} : vector<4x32xf32>, vector<8x32xf32>, vector<4x8xf32> -> vector<4x8xf32>
    %c0_3 = arith.constant 0 : index
    %c0_4 = arith.constant 0 : index
    %4 = vector.load %arg3[%c0_3, %c0_4] : memref<4x32xf32, #tpu.memory_space<vmem>>, vector<4x32xf32>
    %cst_5 = arith.constant dense<0.000000e+00> : vector<4x8xf32>
    %5 = tpu.matmul %4, %0, %cst_5 {dimension_numbers = #tpu.dot_dimension_numbers<[1], [1], [0], [0], [0, 0, 1, 0], [], []>} : vector<4x32xf32>, vector<8x32xf32>, vector<4x8xf32> -> vector<4x8xf32>
    %c0_6 = arith.constant 0 : index
    %c0_7 = arith.constant 0 : index
    %6 = vector.load %arg5[%c0_6, %c0_7] : memref<4x1xf32, #tpu.memory_space<vmem>>, vector<4x1xf32>
    %cst_8 = arith.constant 5.000000e-01 : f32
    %7 = vector.broadcast %cst_8 : f32 to vector<4x8xf32>
    %8 = arith.mulf %7, %3 : vector<4x8xf32>
    %9 = vector.broadcast %6 : vector<4x1xf32> to vector<4x8xf32>
    %10 = arith.subf %9, %8 : vector<4x8xf32>
    %11 = arith.mulf %5, %5 : vector<4x8xf32>
    %c0_9 = arith.constant 0 : index
    %c0_10 = arith.constant 0 : index
    %12 = vector.load %arg4[%c0_9, %c0_10] : memref<4x1xf32, #tpu.memory_space<vmem>>, vector<4x1xf32>
    %13 = vector.broadcast %12 : vector<4x1xf32> to vector<4x8xf32>
    %14 = arith.mulf %11, %13 : vector<4x8xf32>
    %15 = arith.addf %10, %14 : vector<4x8xf32>
    %cst_11 = arith.constant dense<0xFF800000> : vector<8xf32>
    %16 = vector.multi_reduction <maximumf>, %15, %cst_11 [0] : vector<4x8xf32> to vector<8xf32>
    %17 = vector.shape_cast %16 : vector<8xf32> to vector<1x8xf32>
    %18 = vector.broadcast %17 : vector<1x8xf32> to vector<4x8xf32>
    %19 = arith.subf %15, %18 : vector<4x8xf32>
    %20 = math.exp %19 : vector<4x8xf32>
    %cst_12 = arith.constant dense<0.000000e+00> : vector<8xf32>
    %21 = vector.multi_reduction <add>, %20, %cst_12 [0] : vector<4x8xf32> to vector<8xf32>
    %22 = vector.shape_cast %21 : vector<8xf32> to vector<1x8xf32>
    %23 = math.log %22 : vector<1x8xf32>
    %24 = arith.addf %23, %17 : vector<1x8xf32>
    %c0_13 = arith.constant 0 : index
    %c0_14 = arith.constant 0 : index
    %25 = vector.load %arg7[%c0_13, %c0_14] : memref<1x8xf32, #tpu.memory_space<vmem>>, vector<1x8xf32>
    tpu.vector_store %arg7[%c0_13, %c0_14], %24 {strides = array<i32>} : memref<1x8xf32, #tpu.memory_space<vmem>>, vector<1x8xf32>,
    %c0_15 = arith.constant 0 : index
    %c0_16 = arith.constant 0 : index
    %26 = vector.load %arg6[%c0_15, %c0_16] : memref<1x1xf32, #tpu.memory_space<vmem>>, vector<1x1xf32>
    %27 = vector.broadcast %26 : vector<1x1xf32> to vector<1x8xf32>
    %28 = arith.subf %27, %24 : vector<1x8xf32>
    %c0_17 = arith.constant 0 : index
    %c0_18 = arith.constant 0 : index
    %29 = vector.load %arg8[%c0_17, %c0_18] : memref<1x8xf32, #tpu.memory_space<vmem>>, vector<1x8xf32>
    tpu.vector_store %arg8[%c0_17, %c0_18], %28 {strides = array<i32>} : memref<1x8xf32, #tpu.memory_space<vmem>>, vector<1x8xf32>,
    return
  }
  func.func @transform_0(%arg0: i32) -> (i32, i32) {
    %c0_i32 = arith.constant 0 : i32
    %c0_i32_0 = arith.constant 0 : i32
    return %arg0, %c0_i32 : i32, i32
  }
  func.func @transform_1(%arg0: i32) -> (i32, i32) {
    %c0_i32 = arith.constant 0 : i32
    %c0_i32_0 = arith.constant 0 : i32
    %c0_i32_1 = arith.constant 0 : i32
    return %c0_i32, %c0_i32_0 : i32, i32
  }
  func.func @transform_2(%arg0: i32) -> (i32, i32) {
    %c0_i32 = arith.constant 0 : i32
    %c0_i32_0 = arith.constant 0 : i32
    %c0_i32_1 = arith.constant 0 : i32
    return %c0_i32, %c0_i32_0 : i32, i32
  }
  func.func @transform_3(%arg0: i32) -> (i32, i32) {
    %c0_i32 = arith.constant 0 : i32
    %c0_i32_0 = arith.constant 0 : i32
    %c0_i32_1 = arith.constant 0 : i32
    return %c0_i32, %c0_i32_0 : i32, i32
  }
  func.func @transform_4(%arg0: i32) -> (i32, i32) {
    %c0_i32 = arith.constant 0 : i32
    %c0_i32_0 = arith.constant 0 : i32
    %c0_i32_1 = arith.constant 0 : i32
    return %c0_i32, %c0_i32_0 : i32, i32
  }
  func.func @transform_5(%arg0: i32) -> (i32, i32) {
    %c0_i32 = arith.constant 0 : i32
    %c0_i32_0 = arith.constant 0 : i32
    %c0_i32_1 = arith.constant 0 : i32
    return %c0_i32, %c0_i32_0 : i32, i32
  }
  func.func @transform_6(%arg0: i32) -> (i32, i32) {
    %c0_i32 = arith.constant 0 : i32
    %c0_i32_0 = arith.constant 0 : i32
    return %c0_i32, %arg0 : i32, i32
  }
  func.func @transform_7(%arg0: i32) -> (i32, i32) {
    %c0_i32 = arith.constant 0 : i32
    %c0_i32_0 = arith.constant 0 : i32
    return %c0_i32, %arg0 : i32, i32
  }
}

</mosaic_0001>

<llo_original>
// kernel: tpu_custom_call.1
$region0: #{tpu_custom_call.1}
  #allocation0 [shape = 'u32[]', space=smem, size = 0x4, offset = 0x4, fixed_abs, tag = 'smem constant byte address 0x4 - core index']
  #allocation1 [shape = 'u32[72,128]{1,0:T(1,128)}', space=vmem, size = 0x9000, scoped, tag = 'internal scratch']
  #allocation2 [shape = 'f32[1,1]{1,0:T(1,128)S(1)}', space=vmem, size = 0x200, scoped, tag = 'scoped memory for tpu_custom_call.1']
  %s0 = inlined_call_operand.vmem [shape: f32[8,32], index: 0, kind: input, shape index: {}]
  %s1 = inlined_call_operand.vmem [shape: f32[4,32], index: 1, kind: input, shape index: {}]
  %s2 = inlined_call_operand.hbm [shape: f32[4,32], index: 2, kind: input, shape index: {}]
  %s3 = inlined_call_operand.vmem [shape: f32[4,1], index: 3, kind: input, shape index: {}]
  %s4 = inlined_call_operand.vmem [shape: f32[4,1], index: 4, kind: input, shape index: {}]
  %s5 = inlined_call_operand.<no memory space> [shape: f32[1,1], index: 5, kind: input, shape index: {}]
  %s6 = inlined_call_operand.hbm [shape: f32[1,8], index: 6, kind: output, shape index: {0}]
  %s7 = inlined_call_operand.hbm [shape: f32[1,8], index: 7, kind: output, shape index: {1}]
  %8 = xla_tuple %s6, %s7
  %s9 = sld [smem:[#allocation0]]
  $region46: #{tpu_custom_call.1} parent=0
    _
  %s11 = ssub.s32 1, %s9
  %s12 = scalar_select 0, %s11, %s9
  %v13 = vstv %s5
  %14 = vst [vmem:[#allocation2] sm:$0x1] %v13
  $region1: #{tpu_custom_call.1} parent=0
    #allocation3 [shape = 'u8[2048]{0}', space=vmem, size = 0x800, scoped, tag = 'input window, operand 2, single buffered']
    #allocation4 [shape = 's32[1]{0}', space=sflag, size = 0x4, scoped, tag = 'scoped memory for tpu_custom_call.1']
    #allocation5 [shape = 's32[1]{0}', space=sflag, size = 0x4, scoped, tag = 'scoped memory for tpu_custom_call.1']
    #allocation6 [shape = 'u8[512]{0}', space=vmem, size = 0x400, scoped, tag = 'output window, operand 0, single buffered']
    #allocation7 [shape = 'u8[512]{0}', space=vmem, size = 0x400, scoped, tag = 'output window, operand 1, single buffered']
    #allocation8 [shape = 's32[1]{0}', space=sflag, size = 0x4, scoped, tag = 'scoped memory for tpu_custom_call.1']
    %15 = vsyncpa [#allocation4], 0
    %16 = vsyncpa [#allocation5], 0
    %17 = vsyncpa [#allocation8], 0
    // Predicated region
    $region2: #{tpu_custom_call.1} parent=1 // pred_check
      _
    $region3: #{tpu_custom_call.1} parent=1 // pred_check_branch
      %19 = sbr.rel (0) target = $region5
    $region4: #{tpu_custom_call.1} parent=1 // pred_region
      _
    $region5: #{tpu_custom_call.1} parent=1 // pred_fallthru
      _
    // Predicated region
    $region6: #{tpu_custom_call.1} parent=1 // pred_check
      _
    $region7: #{tpu_custom_call.1} parent=1 // pred_check_branch
      %21 = sbr.rel (0) target = $region9
    $region8: #{tpu_custom_call.1} parent=1 // pred_region
      _
    $region9: #{tpu_custom_call.1} parent=1 // pred_fallthru
      _
    // Predicated region
    $region10: #{tpu_custom_call.1} parent=1 // pred_check
      _
    $region11: #{tpu_custom_call.1} parent=1 // pred_check_branch
      %23 = sbr.rel (0) target = $region13
    $region12: #{tpu_custom_call.1} parent=1 // pred_region
      %25 = vsyncadd [#allocation4], 0
      %s27 = sshll.u32 %s2, 4
      %s28 = int_to_ptr.hbm [resolvable:$true] %s27
      %s29 = sshll.u32 [#allocation3], 4
      %s30 = int_to_ptr.vmem [resolvable:$true] %s29
      %32 = dma.hbm_to_vmem [thread:$0]  %s28, 64, %s30, [#allocation4]
    $region13: #{tpu_custom_call.1} parent=1 // pred_fallthru
      _
    // Predicated region
    $region14: #{tpu_custom_call.1} parent=1 // pred_check
      _
    $region15: #{tpu_custom_call.1} parent=1 // pred_check_branch
      %34 = sbr.rel (0) target = $region17
    $region16: #{tpu_custom_call.1} parent=1 // pred_region
      _
    $region17: #{tpu_custom_call.1} parent=1 // pred_fallthru
      _
    // Predicated region
    $region18: #{tpu_custom_call.1} parent=1 // pred_check
      _
    $region19: #{tpu_custom_call.1} parent=1 // pred_check_branch
      %36 = sbr.rel (0) target = $region21
    $region20: #{tpu_custom_call.1} parent=1 // pred_region
      _
    $region21: #{tpu_custom_call.1} parent=1 // pred_fallthru
      _
    // Predicated region
    $region22: #{tpu_custom_call.1} parent=1 // pred_check
      _
    $region23: #{tpu_custom_call.1} parent=1 // pred_check_branch
      %38 = sbr.rel (0) target = $region25
    $region24: #{tpu_custom_call.1} parent=1 // pred_region
      _
    $region25: #{tpu_custom_call.1} parent=1 // pred_fallthru
      _
    // Predicated region
    $region26: #{tpu_custom_call.1} parent=1 // pred_check
      _
    $region27: #{tpu_custom_call.1} parent=1 // pred_check_branch
      %40 = sbr.rel (0) target = $region29
    $region28: #{tpu_custom_call.1} parent=1 // pred_region
      %42 = dma.done [#allocation4], 64
    $region29: #{tpu_custom_call.1} parent=1 // pred_fallthru
      _
    %v43 = vld [vmem:[%s0] sm:$0xff]
    %v44 = vld [vmem:[%s1] sm:$0xf]
    %v45 = vmul.f32 %v43, %v43
    %vm46 = vcmask 261120
    %v48 = vsel %vm46, %v44, 0
    %v51 = vsel %vm46, %v45, 0
    %53 = vmatpush.xpose.msra.mxu0 0.0
    %54 = vmatpush.xpose.msra.mxu0 0.0
    %55 = vmatpush.xpose.msra.mxu0 0.0
    %56 = vmatpush.xpose.msra.mxu0 0.0
    %57 = vmatpush.xpose.msra.mxu0 0.0
    %58 = vmatpush.xpose.msra.mxu0 0.0
    %59 = vmatpush.xpose.msra.mxu0 0.0
    %60 = vmatpush.xpose.msra.mxu0 0.0
    %61 = vmatpush.xpose.msra.mxu0 0.0
    %62 = vmatpush.xpose.msra.mxu0 0.0
    %63 = vmatpush.xpose.msra.mxu0 0.0
    %64 = vmatpush.xpose.msra.mxu0 0.0
    %65 = vmatpush.xpose.msra.mxu0 0.0
    %66 = vmatpush.xpose.msra.mxu0 0.0
    %67 = vmatpush.xpose.msra.mxu0 0.0
    %68 = vmatpush.xpose.msra.mxu0 %v51
    %69 = vmatmul.f32.gmra.mxu0 %v48
    %v70 = vpop.f32.mrf.mxu0
    %v71 = vadd.f32 0.0, %v70
    %72 = vdwg.mxu0
    %v73 = vld [vmem:[#allocation3] sm:$0xf]
    %v75 = vsel %vm46, %v73, 0
    %v78 = vsel %vm46, %v43, 0
    %80 = vmatpush.xpose.msra.mxu0 0.0
    %81 = vmatpush.xpose.msra.mxu0 0.0
    %82 = vmatpush.xpose.msra.mxu0 0.0
    %83 = vmatpush.xpose.msra.mxu0 0.0
    %84 = vmatpush.xpose.msra.mxu0 0.0
    %85 = vmatpush.xpose.msra.mxu0 0.0
    %86 = vmatpush.xpose.msra.mxu0 0.0
    %87 = vmatpush.xpose.msra.mxu0 0.0
    %88 = vmatpush.xpose.msra.mxu0 0.0
    %89 = vmatpush.xpose.msra.mxu0 0.0
    %90 = vmatpush.xpose.msra.mxu0 0.0
    %91 = vmatpush.xpose.msra.mxu0 0.0
    %92 = vmatpush.xpose.msra.mxu0 0.0
    %93 = vmatpush.xpose.msra.mxu0 0.0
    %94 = vmatpush.xpose.msra.mxu0 0.0
    %95 = vmatpush.xpose.msra.mxu0 %v78
    %96 = vmatmul.f32.gmra.mxu0 %v75
    %v97 = vpop.f32.mrf.mxu0
    %v98 = vadd.f32 0.0, %v97
    %99 = vdwg.mxu0
    %v100 = vld [vmem:[%s4] sm:$0xf]
    %v101 = vmul.f32 %v71, 0.5
    %103 = vset.pattern.permute.xlu0 0
    %104 = vperm.xlu0 %103, %v100
    %v105 = vpop.permute.xlu0 %104
    %v107 = vsub.f32 %v105, %v101
    %v108 = vmul.f32 %v98, %v98
    %v109 = vld [vmem:[%s3] sm:$0xf]
    %111 = vset.pattern.permute.xlu0 0
    %112 = vperm.xlu0 %111, %v109
    %v113 = vpop.permute.xlu0 %112
    %v115 = vmul.f32 %v108, %v113
    %v116 = vadd.f32 %v107, %v115
    %vm117 = vcmask 60416
    %v118 = vsel %vm117, %v116, -inf
    %v119 = vrot.slane %v118, 4
    %v120 = vmax.f32 %v118, %v119
    %v121 = vrot.slane %v120, 2
    %v122 = vmax.f32 %v120, %v121
    %v123 = vrot.slane %v122, 1
    %v124 = vmax.f32 %v122, %v123
    %v125 = vsub.f32 %v116, %v124
    %v126 = vmul.f32 %v125, 1.442695
    %v127 = vpow.pop %v126
    %v128 = vsel %vm117, %v127, 0.0
    %v129 = vrot.slane %v128, 4
    %v130 = vadd.f32 %v128, %v129
    %v131 = vrot.slane %v130, 2
    %v132 = vadd.f32 %v130, %v131
    %v133 = vrot.slane %v132, 1
    %v134 = vadd.f32 %v132, %v133
    %v135 = vlog2.pop %v134
    %v136 = vmul.f32 %v135, 0.6931472
    %v137 = vadd.f32 %v136, %v124
    %vm138 = vcmask 57344
    %139 = vst.msk [vmem:[#allocation6] sm:$0x1] %vm138, %v137
    %v140 = vld [vmem:[#allocation2] sm:$0x1]
    %142 = vset.pattern.permute.xlu0 0
    %143 = vperm.xlu0 %142, %v140
    %v144 = vpop.permute.xlu0 %143
    %v146 = vperm.slane %v144, 0
    %v147 = vsub.f32 %v146, %v137
    %148 = vst.msk [vmem:[#allocation7] sm:$0x1] %vm138, %v147
    // Predicated region
    $region30: #{tpu_custom_call.1} parent=1 // pred_check
      _
    $region31: #{tpu_custom_call.1} parent=1 // pred_check_branch
      %150 = sbr.rel (0) target = $region33
    $region32: #{tpu_custom_call.1} parent=1 // pred_region
      %152 = vsyncadd [#allocation5], 0
      %s154 = sshll.u32 [#allocation6], 4
      %s155 = int_to_ptr.vmem [resolvable:$true] %s154
      %s156 = sshll.u32 %s6, 4
      %s157 = int_to_ptr.hbm [resolvable:$true] %s156
      %159 = dma.vmem_to_hbm [thread:$0]  %s155, 16, %s157, [#allocation5]
    $region33: #{tpu_custom_call.1} parent=1 // pred_fallthru
      _
    // Predicated region
    $region34: #{tpu_custom_call.1} parent=1 // pred_check
      _
    $region35: #{tpu_custom_call.1} parent=1 // pred_check_branch
      %161 = sbr.rel (0) target = $region37
    $region36: #{tpu_custom_call.1} parent=1 // pred_region
      %163 = vsyncadd [#allocation8], 0
      %s165 = sshll.u32 [#allocation7], 4
      %s166 = int_to_ptr.vmem [resolvable:$true] %s165
      %s167 = sshll.u32 %s7, 4
      %s168 = int_to_ptr.hbm [resolvable:$true] %s167
      %170 = dma.vmem_to_hbm [thread:$0]  %s166, 16, %s168, [#allocation8]
    $region37: #{tpu_custom_call.1} parent=1 // pred_fallthru
      _
    // Predicated region
    $region38: #{tpu_custom_call.1} parent=1 // pred_check
      _
    $region39: #{tpu_custom_call.1} parent=1 // pred_check_branch
      %172 = sbr.rel (0) target = $region41
    $region40: #{tpu_custom_call.1} parent=1 // pred_region
      %174 = dma.done [#allocation5], 16
    $region41: #{tpu_custom_call.1} parent=1 // pred_fallthru
      _
    // Predicated region
    $region42: #{tpu_custom_call.1} parent=1 // pred_check
      _
    $region43: #{tpu_custom_call.1} parent=1 // pred_check_branch
      %176 = sbr.rel (0) target = $region45
    $region44: #{tpu_custom_call.1} parent=1 // pred_region
      %178 = dma.done [#allocation8], 16
    $region45: #{tpu_custom_call.1} parent=1 // pred_fallthru
      _
    %179 = vsyncpa [#allocation4], 1
    %180 = vsyncpa [#allocation5], 1
    %181 = vsyncpa [#allocation8], 1

</llo_original>
